<compile_context>
chip_gen: v5e
topology: v5e:2x2
jax: 0.10.0
libtpu: 0.0.40
codegen_flags: <defaults>
</compile_context>

<pallas_src>
import functools
import math

import jax
import jax.numpy as jnp
from jax.experimental import pallas as pl
from jax.experimental.pallas import tpu as pltpu


def cls_head_kernel(seq_ref, w_ref, b1_ref, w2_ref, br_ref, out_ref, *, A, S_true):
    """One grid step over b_blk sequences.

    seq_ref : (b_blk, S_pad, H)  backbone sequence_output tile (f32 or bf16)
    w_ref   : (H, A + 128)       [attention W1 | regressor wr zero-padded]
    b1_ref  : (1, A)             attention bias 1 (f32)
    w2_ref  : (1, A)             attention Linear(512,1) weight as a row (f32)
    br_ref  : (1, 1)             regressor bias (f32)
    out_ref : (1, b_blk, 1)      logits for this batch block
    """
    b_blk, S, H = seq_ref.shape
    M = b_blk * S

    # Flatten batch*seq rows (layout no-op: S_pad % 8 == 0) and run ONE MXU
    # matmul producing both the attention projection (columns [:A]) and the
    # per-token regressor projection seq @ wr (column A; columns A+1.. are
    # exact zeros from the zero-padded weight).
    seq2d = seq_ref[...].reshape(M, H)
    full = jnp.dot(seq2d, w_ref[...], preferred_element_type=jnp.float32)

    h = jnp.tanh(full[:, :A] + b1_ref[...])                        # (M, A) f32
    scores = jnp.sum(h * w2_ref[...], axis=-1, keepdims=True)      # (M, 1)
    sr = jnp.sum(full[:, A:], axis=-1, keepdims=True)              # (M, 1) = seq @ wr

    scores = scores.reshape(b_blk, S, 1)
    sr = sr.reshape(b_blk, S, 1)

    if S != S_true:  # static branch: mask padded sequence positions
        pos = jax.lax.broadcasted_iota(jnp.int32, (b_blk, S, 1), 1)
        scores = jnp.where(pos < S_true, scores, -1e30)

    # Softmax over the sequence axis (torch Softmax(dim=1)). The pre-softmax
    # bias b2 is dropped: softmax is shift-invariant, so it is an exact no-op.
    m = jnp.max(scores, axis=1, keepdims=True)
    e = jnp.exp(scores - m)
    w = e * pl.reciprocal(jnp.sum(e, axis=1, keepdims=True), approx=True)

    # Regressor folded before pooling (linearity):
    #   (sum_s w_s * seq_s) @ wr + br == sum_s w_s * (seq_s @ wr) + br
    logits = jnp.sum(w * sr, axis=1) + br_ref[0, 0]                # (b_blk, 1)
    out_ref[...] = logits[None]                                    # (1, b_blk, 1)


def _vmem_caps():
    """Generation-aware (block budget, vmem_limit) in bytes.

    v5e/v6e (128 MiB VMEM): ~90 MiB block budget, ~109 MiB limit.
    v7x      (64 MiB VMEM): ~45 MiB block budget, ~54 MiB limit -- never the
    full physical VMEM, leaving room for Mosaic internal scratch.
    """
    cap = 64 * 1024 * 1024  # conservative fallback = v7x per-TensorCore VMEM
    try:
        info = pltpu.get_tpu_info()
        cap = int(getattr(info, "vmem_capacity_bytes", cap)) or cap
    except Exception:
        pass
    budget = (cap * 7) // 10
    limit = min((cap * 17) // 20, cap - 8 * 1024 * 1024)
    return int(budget), int(limit)


def _choose_b_blk(B, S_pad, H, A, RW, in_bytes, budget):
    """Sequences per grid step, driven by the per-generation VMEM budget."""
    W = A + RW
    # Per-sequence live VMEM bytes in a step: double-buffered seq block,
    # f32 MXU output, tanh output + one A-wide elementwise temp, softmax cols.
    per_b = S_pad * (2 * H * in_bytes + 4 * W + 8 * A + 16)
    # Weight/bias blocks (double-buffered) + headroom for Mosaic scratch.
    fixed = 2 * (H * W * in_bytes + 4 * (2 * A + 1)) + 2 * 1024 * 1024
    max_b = max(1, int((budget - fixed) // per_b))
    if max_b >= B:
        # Whole batch fits in one step; still split into two "parallel" steps
        # so both v7x TensorCores get work (near-free on v5e/v6e).
        return max(1, -(-B // 2))
    # Keep M = b_blk * S_pad a multiple of 256 (MXU tile) when affordable.
    align = 256 // math.gcd(S_pad, 256)
    if max_b >= align:
        max_b = (max_b // align) * align
    return int(max_b)


def cls_model_head(seq, w1, b1, w2, b2, wr, br, *, b_blk=None,
                   matmul_dtype=None, seq_buffers=2):
    """seq: (B, S, H). Returns (B, 1) float32 logits.

    matmul_dtype: optional (e.g. jnp.bfloat16) -- seq and the fused projection
      weight are cast at the HBM boundary so the dominant seq DMA runs at the
      narrow width; all post-matmul math stays f32.
    seq_buffers: pipeline depth for the seq stream (3 can help on v5e).
    """
    del b2  # pre-softmax bias: softmax shift invariance makes it an exact no-op
    B, S, H = seq.shape
    A = w1.shape[1]  # 512
    RW = 128         # lane-padded width for the folded regressor column

    # Pad S to a sublane multiple so the in-kernel flatten is a layout no-op;
    # padded positions are masked out of the softmax inside the kernel.
    S_pad = -(-S // 8) * 8
    if S_pad != S:
        seq = jnp.pad(seq, ((0, 0), (0, S_pad - S), (0, 0)))

    # Fold the regressor weight into the attention projection as extra MXU
    # columns: one (M,H)x(H,A+RW) matmul yields both the tanh input and seq@wr.
    w_comb = jnp.concatenate(
        [w1, jnp.pad(wr.reshape(H, 1), ((0, 0), (0, RW - 1)))], axis=1)

    in_dtype = matmul_dtype if matmul_dtype is not None else seq.dtype
    seq_in = seq.astype(in_dtype)   # narrow dtype at the HBM boundary
    w_in = w_comb.astype(in_dtype)  # weight cast hoisted out of the grid loop

    b1_2d = b1.reshape(1, A).astype(jnp.float32)
    w2_2d = w2.reshape(1, A).astype(jnp.float32)
    br_2d = br.reshape(1, 1).astype(jnp.float32)

    budget, vmem_limit = _vmem_caps()
    if b_blk is None:
        b_blk = _choose_b_blk(B, S_pad, H, A, RW,
                              seq_in.dtype.itemsize, budget)
    b_blk = int(min(b_blk, B))
    num_steps = -(-B // b_blk)
    Bp = num_steps * b_blk
    if Bp != B:
        # Zero-padded batch rows produce finite junk logits, sliced off below.
        seq_in = jnp.pad(seq_in, ((0, Bp - B), (0, 0), (0, 0)))

    seq_spec_kwargs = {}
    if seq_buffers is not None and seq_buffers != 2:
        seq_spec_kwargs["pipeline_mode"] = pl.Buffered(seq_buffers)
    seq_spec = pl.BlockSpec((b_blk, S_pad, H), lambda b: (b, 0, 0),
                            **seq_spec_kwargs)

    out3 = pl.pallas_call(
        functools.partial(cls_head_kernel, A=A, S_true=S),
        out_shape=jax.ShapeDtypeStruct((num_steps, b_blk, 1), jnp.float32),
        grid_spec=pltpu.PrefetchScalarGridSpec(
            num_scalar_prefetch=0,
            grid=(num_steps,),
            in_specs=[
                seq_spec,                                      # streamed seq tile
                # Constant-index weight blocks: DMA'd once, revisited in VMEM.
                pl.BlockSpec((H, A + RW), lambda b: (0, 0)),   # [W1 | wr]
                pl.BlockSpec((1, A), lambda b: (0, 0)),        # b1
                pl.BlockSpec((1, A), lambda b: (0, 0)),        # W2 row
                pl.BlockSpec((1, 1), lambda b: (0, 0)),        # br
            ],
            # Per-step output block -> the batch grid axis can be "parallel".
            out_specs=pl.BlockSpec((1, b_blk, 1), lambda b: (b, 0, 0)),
        ),
        compiler_params=pltpu.CompilerParams(
            dimension_semantics=("parallel",),
            vmem_limit_bytes=vmem_limit),
    )(seq_in, w_in, b1_2d, w2_2d, br_2d)

    return out3.reshape(Bp, 1)[:B]


def reference_head(seq, w1, b1, w2, b2, wr, br):
    """Pure-JAX reference for correctness checking."""
    h = jnp.tanh(jnp.einsum("bsh,ha->bsa", seq, w1) + b1)          # (B,S,512)
    scores = jnp.einsum("bsa,ao->bso", h, w2) + b2                 # (B,S,1)
    weights = jax.nn.softmax(scores, axis=1)
    pooled = jnp.sum(weights * seq, axis=1)                        # (B,H)
    return pooled @ wr + br                                        # (B,1)


if __name__ == "__main__":
    B, S, H, A = 2, 8, 32, 512
    init_range = 0.02  # config.initializer_range, matches _init_weights

    key = jax.random.PRNGKey(0)
    k_seq, k_w1, k_w2, k_wr = jax.random.split(key, 4)

    seq = jax.random.normal(k_seq, (B, S, H), dtype=jnp.float32)

    # attention = Sequential(Linear(H,512), Tanh, Linear(512,1), Softmax(dim=1))
    w1 = init_range * jax.random.normal(k_w1, (H, A), dtype=jnp.float32)
    b1 = jnp.zeros((A,), dtype=jnp.float32)
    w2 = init_range * jax.random.normal(k_w2, (A, 1), dtype=jnp.float32)
    b2 = jnp.zeros((1,), dtype=jnp.float32)

    # regressor = Sequential(Linear(H, 1))
    wr = init_range * jax.random.normal(k_wr, (H, 1), dtype=jnp.float32)
    br = jnp.zeros((1,), dtype=jnp.float32)

    ref = reference_head(seq, w1, b1, w2, b2, wr, br)

    # Auto path: generation-aware VMEM budget; small B splits into 2 parallel
    # steps (one per v7x TensorCore), exercising the multi-step grid.
    out = jax.block_until_ready(cls_model_head(seq, w1, b1, w2, b2, wr, br))
    assert out.shape == (B, 1), out.shape
    # approx reciprocal in the softmax -> slightly looser tolerance than exact.
    assert jnp.allclose(out, ref, atol=1e-3, rtol=1e-3), (out, ref)

    # Single-step path (whole batch in one block).
    out1 = jax.block_until_ready(
        cls_model_head(seq, w1, b1, w2, b2, wr, br, b_blk=2))
    assert out1.shape == (B, 1), out1.shape
    assert jnp.allclose(out1, ref, atol=1e-3, rtol=1e-3), (out1, ref)

    # bf16-at-the-HBM-boundary matmul path (v6e/v7x); looser tolerance.
    outb = jax.block_until_ready(
        cls_model_head(seq, w1, b1, w2, b2, wr, br, matmul_dtype=jnp.bfloat16))
    assert outb.shape == (B, 1), outb.shape
    assert jnp.allclose(outb, ref, atol=5e-3, rtol=5e-3), (outb, ref)

    print("KERNEL_OK")
</pallas_src>

<mosaic_0001>
module attributes {stable_mosaic.version = 11 : i64} {
  func.func @cls_head_kernel(%arg0: i32, %arg1: memref<1x8x32xf32, #tpu.memory_space<vmem>>, %arg2: memref<32x640xf32, #tpu.memory_space<vmem>>, %arg3: memref<1x512xf32, #tpu.memory_space<vmem>>, %arg4: memref<1x512xf32, #tpu.memory_space<vmem>>, %arg5: memref<1x1xf32, #tpu.memory_space<vmem>>, %arg6: memref<1x1x1xf32, #tpu.memory_space<vmem>>) attributes {dimension_semantics = [#tpu.dimension_semantics<parallel>], iteration_bounds = array<i64: 2>, scalar_prefetch = 0 : i64, scratch_operands = 0 : i64, tpu.core_type = #tpu.core_type<tc>, window_params = [{transform_indices = @transform_0, window_bounds = array<i64: 1, 8, 32>}, {pipeline_mode = #tpu.pipeline_mode<synchronous>, transform_indices = @transform_1, window_bounds = array<i64: 32, 640>}, {pipeline_mode = #tpu.pipeline_mode<synchronous>, transform_indices = @transform_2, window_bounds = array<i64: 1, 512>}, {pipeline_mode = #tpu.pipeline_mode<synchronous>, transform_indices = @transform_3, window_bounds = array<i64: 1, 512>}, {pipeline_mode = #tpu.pipeline_mode<synchronous>, transform_indices = @transform_4, window_bounds = array<i64: 1, 1>}, {transform_indices = @transform_5, window_bounds = array<i64: 1, 1, 1>}]} {
    %c0 = arith.constant 0 : index
    %c0_0 = arith.constant 0 : index
    %c0_1 = arith.constant 0 : index
    %0 = vector.load %arg1[%c0, %c0_0, %c0_1] : memref<1x8x32xf32, #tpu.memory_space<vmem>>, vector<1x8x32xf32>
    %1 = vector.shape_cast %0 : vector<1x8x32xf32> to vector<8x32xf32>
    %c0_2 = arith.constant 0 : index
    %c0_3 = arith.constant 0 : index
    %2 = vector.load %arg2[%c0_2, %c0_3] : memref<32x640xf32, #tpu.memory_space<vmem>>, vector<32x640xf32>
    %cst = arith.constant dense<0.000000e+00> : vector<8x640xf32>
    %3 = tpu.matmul %1, %2, %cst {dimension_numbers = #tpu.dot_dimension_numbers<[1], [0], [0], [1], [0, 0, 1, 1], [], []>} : vector<8x32xf32>, vector<32x640xf32>, vector<8x640xf32> -> vector<8x640xf32>
    %4 = vector.extract_strided_slice %3 {offsets = [0, 0], sizes = [8, 512], strides = [1, 1]} : vector<8x640xf32> to vector<8x512xf32>
    %c0_4 = arith.constant 0 : index
    %c0_5 = arith.constant 0 : index
    %5 = vector.load %arg3[%c0_4, %c0_5] : memref<1x512xf32, #tpu.memory_space<vmem>>, vector<1x512xf32>
    %6 = vector.broadcast %5 : vector<1x512xf32> to vector<8x512xf32>
    %7 = arith.addf %4, %6 : vector<8x512xf32>
    %8 = math.tanh %7 : vector<8x512xf32>
    %c0_6 = arith.constant 0 : index
    %c0_7 = arith.constant 0 : index
    %9 = vector.load %arg4[%c0_6, %c0_7] : memref<1x512xf32, #tpu.memory_space<vmem>>, vector<1x512xf32>
    %10 = vector.broadcast %9 : vector<1x512xf32> to vector<8x512xf32>
    %11 = arith.mulf %8, %10 : vector<8x512xf32>
    %cst_8 = arith.constant dense<0.000000e+00> : vector<8xf32>
    %12 = vector.multi_reduction <add>, %11, %cst_8 [1] : vector<8x512xf32> to vector<8xf32>
    %13 = vector.shape_cast %12 : vector<8xf32> to vector<8x1xf32>
    %14 = vector.extract_strided_slice %3 {offsets = [0, 512], sizes = [8, 128], strides = [1, 1]} : vector<8x640xf32> to vector<8x128xf32>
    %cst_9 = arith.constant dense<0.000000e+00> : vector<8xf32>
    %15 = vector.multi_reduction <add>, %14, %cst_9 [1] : vector<8x128xf32> to vector<8xf32>
    %16 = vector.shape_cast %15 : vector<8xf32> to vector<8x1xf32>
    %17 = vector.shape_cast %13 : vector<8x1xf32> to vector<1x8x1xf32>
    %18 = vector.shape_cast %16 : vector<8x1xf32> to vector<1x8x1xf32>
    %cst_10 = arith.constant dense<0xFF800000> : vector<1x1xf32>
    %19 = vector.multi_reduction <maximumf>, %17, %cst_10 [1] : vector<1x8x1xf32> to vector<1x1xf32>
    %20 = vector.shape_cast %19 : vector<1x1xf32> to vector<1x1x1xf32>
    %21 = vector.broadcast %20 : vector<1x1x1xf32> to vector<1x8x1xf32>
    %22 = arith.subf %17, %21 : vector<1x8x1xf32>
    %23 = math.exp %22 : vector<1x8x1xf32>
    %cst_11 = arith.constant dense<0.000000e+00> : vector<1x1xf32>
    %24 = vector.multi_reduction <add>, %23, %cst_11 [1] : vector<1x8x1xf32> to vector<1x1xf32>
    %25 = vector.shape_cast %24 : vector<1x1xf32> to vector<1x1x1xf32>
    %26 = tpu.reciprocal %25 {approx = true} : vector<1x1x1xf32> -> vector<1x1x1xf32>
    %27 = vector.broadcast %26 : vector<1x1x1xf32> to vector<1x8x1xf32>
    %28 = arith.mulf %23, %27 : vector<1x8x1xf32>
    %29 = arith.mulf %28, %18 : vector<1x8x1xf32>
    %cst_12 = arith.constant dense<0.000000e+00> : vector<1x1xf32>
    %30 = vector.multi_reduction <add>, %29, %cst_12 [1] : vector<1x8x1xf32> to vector<1x1xf32>
    %c0_13 = arith.constant 0 : index
    %c0_14 = arith.constant 0 : index
    %31 = vector.load %arg5[%c0_13, %c0_14] : memref<1x1xf32, #tpu.memory_space<vmem>>, vector<1x1xf32>
    %32 = vector.extract %31[0, 0] : f32 from vector<1x1xf32>
    %33 = vector.broadcast %32 : f32 to vector<1x1xf32>
    %34 = arith.addf %30, %33 : vector<1x1xf32>
    %35 = vector.shape_cast %34 : vector<1x1xf32> to vector<1x1x1xf32>
    %c0_15 = arith.constant 0 : index
    %c0_16 = arith.constant 0 : index
    %c0_17 = arith.constant 0 : index
    %36 = vector.load %arg6[%c0_15, %c0_16, %c0_17] : memref<1x1x1xf32, #tpu.memory_space<vmem>>, vector<1x1x1xf32>
    tpu.vector_store %arg6[%c0_15, %c0_16, %c0_17], %35 {strides = array<i32>} : memref<1x1x1xf32, #tpu.memory_space<vmem>>, vector<1x1x1xf32>,
    return
  }
  func.func @transform_0(%arg0: i32) -> (i32, i32, i32) {
    %c0_i32 = arith.constant 0 : i32
    %c0_i32_0 = arith.constant 0 : i32
    %c0_i32_1 = arith.constant 0 : i32
    return %arg0, %c0_i32, %c0_i32_0 : i32, i32, i32
  }
  func.func @transform_1(%arg0: i32) -> (i32, i32) {
    %c0_i32 = arith.constant 0 : i32
    %c0_i32_0 = arith.constant 0 : i32
    %c0_i32_1 = arith.constant 0 : i32
    return %c0_i32, %c0_i32_0 : i32, i32
  }
  func.func @transform_2(%arg0: i32) -> (i32, i32) {
    %c0_i32 = arith.constant 0 : i32
    %c0_i32_0 = arith.constant 0 : i32
    %c0_i32_1 = arith.constant 0 : i32
    return %c0_i32, %c0_i32_0 : i32, i32
  }
  func.func @transform_3(%arg0: i32) -> (i32, i32) {
    %c0_i32 = arith.constant 0 : i32
    %c0_i32_0 = arith.constant 0 : i32
    %c0_i32_1 = arith.constant 0 : i32
    return %c0_i32, %c0_i32_0 : i32, i32
  }
  func.func @transform_4(%arg0: i32) -> (i32, i32) {
    %c0_i32 = arith.constant 0 : i32
    %c0_i32_0 = arith.constant 0 : i32
    %c0_i32_1 = arith.constant 0 : i32
    return %c0_i32, %c0_i32_0 : i32, i32
  }
  func.func @transform_5(%arg0: i32) -> (i32, i32, i32) {
    %c0_i32 = arith.constant 0 : i32
    %c0_i32_0 = arith.constant 0 : i32
    %c0_i32_1 = arith.constant 0 : i32
    return %arg0, %c0_i32, %c0_i32_0 : i32, i32, i32
  }
}

</mosaic_0001>

<llo_original>
// kernel: tpu_custom_call.1
$region0: #{tpu_custom_call.1}
  #allocation0 [shape = 'u32[]', space=smem, size = 0x4, offset = 0x4, fixed_abs, tag = 'smem constant byte address 0x4 - core index']
  #allocation1 [shape = 'u32[72,128]{1,0:T(1,128)}', space=vmem, size = 0x9000, scoped, tag = 'internal scratch']
  #allocation2 [shape = 'f32[1,1]{1,0:T(1,128)S(1)}', space=vmem, size = 0x200, scoped, tag = 'scoped memory for tpu_custom_call.1']
  %s0 = inlined_call_operand.hbm [shape: f32[2,8,32], index: 0, kind: input, shape index: {}]
  %s1 = inlined_call_operand.hbm [shape: f32[32,640], index: 1, kind: input, shape index: {}]
  %s2 = inlined_call_operand.hbm [shape: f32[1,512], index: 2, kind: input, shape index: {}]
  %s3 = inlined_call_operand.vmem [shape: f32[1,512], index: 3, kind: input, shape index: {}]
  %s4 = inlined_call_operand.<no memory space> [shape: f32[1,1], index: 4, kind: input, shape index: {}]
  %s5 = inlined_call_operand.vmem [shape: f32[2,1,1], index: 5, kind: output, shape index: {}]
  %s6 = sld [smem:[#allocation0]]
  $region65: #{tpu_custom_call.1} parent=0
    _
  %s8 = ssub.s32 1, %s6
  %s9 = scalar_select 0, %s8, %s6
  %v10 = vstv %s4
  %11 = vst [vmem:[#allocation2] sm:$0x1] %v10
  $region1: #{tpu_custom_call.1} parent=0
    #allocation3 [shape = 'u8[8192]{0}', space=vmem, size = 0x2000, scoped, tag = 'input window, operand 0']
    #allocation4 [shape = 's32[2]{0}', space=sflag, size = 0x8, scoped, tag = 'scoped memory for tpu_custom_call.1']
    #allocation5 [shape = 'u8[81920]{0}', space=vmem, size = 0x14000, scoped, tag = 'input window, operand 1, single buffered']
    #allocation6 [shape = 's32[1]{0}', space=sflag, size = 0x4, scoped, tag = 'scoped memory for tpu_custom_call.1']
    #allocation7 [shape = 'u8[2048]{0}', space=vmem, size = 0x800, scoped, tag = 'input window, operand 2, single buffered']
    %12 = vsyncpa [#allocation4], 0
    %s13 = scalar_lea.sflag [#allocation4], 1
    %14 = vsyncpa %s13, 0
    %15 = vsyncpa [#allocation6], 0
    loop: start=0, step=1, limit=4
    $region2: #{tpu_custom_call.1} parent=1 // loop_pre_header
      _
    $region3: #{tpu_custom_call.1} parent=1 // loop_header
      %s17 = sphi 0, %s21
      %p18 = scmp.ge.s32.totalorder %s17, 4
      %s27 = sphi 0, %s29
      %s30 = sphi 0, %s27
      %s31 = sphi 0, %s30
      %s47 = sphi 0, %s31
      %s51 = sphi 0, %s51
      %s53 = sphi 0, %s51
      %s54 = sphi 0, %s53
      %s68 = sphi 0, %s54
      %s72 = sphi 0, %s72
      %s74 = sphi 0, %s72
      %s75 = sphi 0, %s74
      %s89 = sphi 0, %s75
      %s93 = sphi 0, %s93
      %s95 = sphi 0, %s93
      %s96 = sphi 0, %s95
      %s110 = sphi 0, %s96
      %s114 = sphi 0, %s114
      %s116 = sphi 0, %s114
      %s117 = sphi 0, %s116
      %s131 = sphi 0, %s117
      %s137 = sphi 0, %s139
      %s140 = sphi 0, %s137
      %s141 = sphi 0, %s140
      %s157 = sphi 0, %s141
    $region4: #{tpu_custom_call.1} parent=1 // loop_header_branch
      %20 = sbr.rel (%p18) target = $region8
    $region5: #{tpu_custom_call.1} parent=1 // loop_body
      %s22 = ssub.s32 %s17, 1
      %s23 = ssub.s32 %s17, 2
      %s24 = sadd.s32 %s17, 1
      %s25 = ssub.s32 %s17, %s24
      %p26 = scmp.eq.s32.totalorder %s25, 0
      %s28 = sadd.s32 %s27, 1
      %s29 = scalar_select %p26, %s27, %s28
      %p32 = pneg %p26
      %p33 = scmp.eq.s32.totalorder %s17, 1
      %p34 = por %p32, %p33
      %p35 = scmp.ne.s32.totalorder %s27, %s30
      %p36 = scmp.eq.s32.totalorder %s17, 0
      %p37 = por %p35, %p36
      %p38 = scmp.ne.s32.totalorder %s27, %s30
      %p39 = scmp.eq.s32.totalorder %s22, 1
      %p40 = por %p38, %p39
      %p41 = scmp.ne.s32.totalorder %s30, %s31
      %p42 = scmp.eq.s32.totalorder %s22, 0
      %p43 = por %p41, %p42
      %p44 = scmp.ne.s32.totalorder %s30, %s31
      %p45 = scmp.eq.s32.totalorder %s23, 1
      %p46 = por %p44, %p45
      %p48 = scmp.ne.s32.totalorder %s31, %s47
      %p49 = scmp.eq.s32.totalorder %s23, 0
      %p50 = por %p48, %p49
      %s52 = sadd.s32 %s51, 1
      %p55 = scmp.eq.s32.totalorder %s17, 1
      %p56 = scmp.ne.s32.totalorder %s51, %s53
      %p57 = scmp.eq.s32.totalorder %s17, 0
      %p58 = por %p56, %p57
      %p59 = scmp.ne.s32.totalorder %s51, %s53
      %p60 = scmp.eq.s32.totalorder %s22, 1
      %p61 = por %p59, %p60
      %p62 = scmp.ne.s32.totalorder %s53, %s54
      %p63 = scmp.eq.s32.totalorder %s22, 0
      %p64 = por %p62, %p63
      %p65 = scmp.ne.s32.totalorder %s53, %s54
      %p66 = scmp.eq.s32.totalorder %s23, 1
      %p67 = por %p65, %p66
      %p69 = scmp.ne.s32.totalorder %s54, %s68
      %p70 = scmp.eq.s32.totalorder %s23, 0
      %p71 = por %p69, %p70
      %s73 = sadd.s32 %s72, 1
      %p76 = scmp.eq.s32.totalorder %s17, 1
      %p77 = scmp.ne.s32.totalorder %s72, %s74
      %p78 = scmp.eq.s32.totalorder %s17, 0
      %p79 = por %p77, %p78
      %p80 = scmp.ne.s32.totalorder %s72, %s74
      %p81 = scmp.eq.s32.totalorder %s22, 1
      %p82 = por %p80, %p81
      %p83 = scmp.ne.s32.totalorder %s74, %s75
      %p84 = scmp.eq.s32.totalorder %s22, 0
      %p85 = por %p83, %p84
      %p86 = scmp.ne.s32.totalorder %s74, %s75
      %p87 = scmp.eq.s32.totalorder %s23, 1
      %p88 = por %p86, %p87
      %p90 = scmp.ne.s32.totalorder %s75, %s89
      %p91 = scmp.eq.s32.totalorder %s23, 0
      %p92 = por %p90, %p91
      %s94 = sadd.s32 %s93, 1
      %p97 = scmp.eq.s32.totalorder %s17, 1
      %p98 = scmp.ne.s32.totalorder %s93, %s95
      %p99 = scmp.eq.s32.totalorder %s17, 0
      %p100 = por %p98, %p99
      %p101 = scmp.ne.s32.totalorder %s93, %s95
      %p102 = scmp.eq.s32.totalorder %s22, 1
      %p103 = por %p101, %p102
      %p104 = scmp.ne.s32.totalorder %s95, %s96
      %p105 = scmp.eq.s32.totalorder %s22, 0
      %p106 = por %p104, %p105
      %p107 = scmp.ne.s32.totalorder %s95, %s96
      %p108 = scmp.eq.s32.totalorder %s23, 1
      %p109 = por %p107, %p108
      %p111 = scmp.ne.s32.totalorder %s96, %s110
      %p112 = scmp.eq.s32.totalorder %s23, 0
      %p113 = por %p111, %p112
      %s115 = sadd.s32 %s114, 1
      %p118 = scmp.eq.s32.totalorder %s17, 1
      %p119 = scmp.ne.s32.totalorder %s114, %s116
      %p120 = scmp.eq.s32.totalorder %s17, 0
      %p121 = por %p119, %p120
      %p122 = scmp.ne.s32.totalorder %s114, %s116
      %p123 = scmp.eq.s32.totalorder %s22, 1
      %p124 = por %p122, %p123
      %p125 = scmp.ne.s32.totalorder %s116, %s117
      %p126 = scmp.eq.s32.totalorder %s22, 0
      %p127 = por %p125, %p126
      %p128 = scmp.ne.s32.totalorder %s116, %s117
      %p129 = scmp.eq.s32.totalorder %s23, 1
      %p130 = por %p128, %p129
      %p132 = scmp.ne.s32.totalorder %s117, %s131
      %p133 = scmp.eq.s32.totalorder %s23, 0
      %p134 = por %p132, %p133
      %s135 = ssub.s32 %s17, %s24
      %p136 = scmp.eq.s32.totalorder %s135, 0
      %s138 = sadd.s32 %s137, 1
      %s139 = scalar_select %p136, %s137, %s138
      %p142 = pneg %p136
      %p143 = scmp.eq.s32.totalorder %s17, 1
      %p144 = por %p142, %p143
      %p145 = scmp.ne.s32.totalorder %s137, %s140
      %p146 = scmp.eq.s32.totalorder %s17, 0
      %p147 = por %p145, %p146
      %p148 = scmp.ne.s32.totalorder %s137, %s140
      %p149 = scmp.eq.s32.totalorder %s22, 1
      %p150 = por %p148, %p149
      %p151 = scmp.ne.s32.totalorder %s140, %s141
      %p152 = scmp.eq.s32.totalorder %s22, 0
      %p153 = por %p151, %p152
      %p154 = scmp.ne.s32.totalorder %s140, %s141
      %p155 = scmp.eq.s32.totalorder %s23, 1
      %p156 = por %p154, %p155
      %p158 = scmp.ne.s32.totalorder %s141, %s157
      %p159 = scmp.eq.s32.totalorder %s23, 0
      %p160 = por %p158, %p159
      %p161 = scmp.le.s32.totalorder 1, %s17
      %p162 = scmp.lt.s32.totalorder %s17, 3
      %p163 = pnand %p161, %p162
      %p164 = pneg %p163
      // Predicated region
      $region9: #{tpu_custom_call.1} parent=5 // pred_check
        _
      $region10: #{tpu_custom_call.1} parent=5 // pred_check_branch
        %166 = sbr.rel (%p163) target = $region12
      $region11: #{tpu_custom_call.1} parent=5 // pred_region
        %s167 = ssub.s32 %s17, 1
        // Predicated region
        $region13: #{tpu_custom_call.1} parent=11 // pred_check
          %p168 = pneg %p64
        $region14: #{tpu_custom_call.1} parent=11 // pred_check_branch
          %170 = sbr.rel (%p168) target = $region16
        $region15: #{tpu_custom_call.1} parent=11 // pred_region
          %172 = vsyncadd [#allocation6], 0
          %s173 = sshll.u32 %s1, 4
          %s174 = int_to_ptr.hbm [resolvable:$true] %s173
          %s175 = sshll.u32 [#allocation5], 4
          %s176 = int_to_ptr.vmem [resolvable:$true] %s175
          %181 = dma.hbm_to_vmem [thread:$0]  %s174, 2560, %s176, [#allocation6], 640, 640, 40
        $region16: #{tpu_custom_call.1} parent=11 // pred_fallthru
          _
        // Predicated region
        $region17: #{tpu_custom_call.1} parent=11 // pred_check
          %p182 = pneg %p85
        $region18: #{tpu_custom_call.1} parent=11 // pred_check_branch
          %184 = sbr.rel (%p182) target = $region20
        $region19: #{tpu_custom_call.1} parent=11 // pred_region
          %186 = vsyncadd [#allocation6], 0
          %s188 = sshll.u32 %s2, 4
          %s189 = int_to_ptr.hbm [resolvable:$true] %s188
          %s190 = sshll.u32 [#allocation7], 4
          %s191 = int_to_ptr.vmem [resolvable:$true] %s190
          %193 = dma.hbm_to_vmem [thread:$0]  %s189, 64, %s191, [#allocation6]
        $region20: #{tpu_custom_call.1} parent=11 // pred_fallthru
          _
        // Predicated region
        $region21: #{tpu_custom_call.1} parent=11 // pred_check
          %p194 = pneg %p106
        $region22: #{tpu_custom_call.1} parent=11 // pred_check_branch
          %196 = sbr.rel (%p194) target = $region24
        $region23: #{tpu_custom_call.1} parent=11 // pred_region
          _
        $region24: #{tpu_custom_call.1} parent=11 // pred_fallthru
          _
        // Predicated region
        $region25: #{tpu_custom_call.1} parent=11 // pred_check
          %p197 = pneg %p127
        $region26: #{tpu_custom_call.1} parent=11 // pred_check_branch
          %199 = sbr.rel (%p197) target = $region28
        $region27: #{tpu_custom_call.1} parent=11 // pred_region
          _
        $region28: #{tpu_custom_call.1} parent=11 // pred_fallthru
          _
      $region12: #{tpu_custom_call.1} parent=5 // pred_fallthru
        _
      %p200 = scmp.lt.s32.totalorder %s17, 2
      // Predicated region
      $region29: #{tpu_custom_call.1} parent=5 // pred_check
        %p201 = pneg %p200
      $region30: #{tpu_custom_call.1} parent=5 // pred_check_branch
        %203 = sbr.rel (%p201) target = $region32
      $region31: #{tpu_custom_call.1} parent=5 // pred_region
        // Predicated region
        $region33: #{tpu_custom_call.1} parent=31 // pred_check
          %p204 = pneg %p37
        $region34: #{tpu_custom_call.1} parent=31 // pred_check_branch
          %206 = sbr.rel (%p204) target = $region36
        $region35: #{tpu_custom_call.1} parent=31 // pred_region
          %s207 = sand.u32 %s27, 1
          %s208 = scalar_lea.sflag [#allocation4], %s207
          %s209 = sand.u32 %s27, 1
          %s210 = smul.addr %s209, 8
          %s211 = scalar_lea.vmem [#allocation3], %s210
          %213 = vsyncadd %s208, 0
          %s214 = smul.addr %s17, 8
          %s215 = scalar_lea.hbm %s0, %s214
          %s217 = sshll.u32 %s215, 4
          %s218 = int_to_ptr.hbm [resolvable:$true] %s217
          %s219 = sshll.u32 %s211, 4
          %s220 = int_to_ptr.vmem [resolvable:$true] %s219
          %222 = dma.hbm_to_vmem [thread:$0]  %s218, 128, %s220, %s208
        $region36: #{tpu_custom_call.1} parent=31 // pred_fallthru
          _
      $region32: #{tpu_custom_call.1} parent=5 // pred_fallthru
        _
      %p223 = scmp.le.s32.totalorder 1, %s17
      %p224 = scmp.lt.s32.totalorder %s17, 3
      %p225 = pnand %p223, %p224
      %p226 = pneg %p225
      // Predicated region
      $region37: #{tpu_custom_call.1} parent=5 // pred_check
        _
      $region38: #{tpu_custom_call.1} parent=5 // pred_check_branch
        %228 = sbr.rel (%p225) target = $region40
      $region39: #{tpu_custom_call.1} parent=5 // pred_region
        %s229 = ssub.s32 %s17, 1
        %s230 = sand.u32 %s30, 1
        %s231 = scalar_lea.sflag [#allocation4], %s230
        %s232 = sand.u32 %s30, 1
        %s233 = smul.addr %s232, 8
        %s234 = scalar_lea.vmem [#allocation3], %s233
        // Predicated region
        $region41: #{tpu_custom_call.1} parent=39 // pred_check
          %p235 = pneg %p43
        $region42: #{tpu_custom_call.1} parent=39 // pred_check_branch
          %237 = sbr.rel (%p235) target = $region44
        $region43: #{tpu_custom_call.1} parent=39 // pred_region
          %239 = dma.done %s231, 128
        $region44: #{tpu_custom_call.1} parent=39 // pred_fallthru
          _
        // Predicated region
        $region45: #{tpu_custom_call.1} parent=39 // pred_check
          %p240 = pneg %p64
        $region46: #{tpu_custom_call.1} parent=39 // pred_check_branch
          %242 = sbr.rel (%p240) target = $region48
        $region47: #{tpu_custom_call.1} parent=39 // pred_region
          %244 = dma.done [#allocation6], 2560
        $region48: #{tpu_custom_call.1} parent=39 // pred_fallthru
          _
        // Predicated region
        $region49: #{tpu_custom_call.1} parent=39 // pred_check
          %p245 = pneg %p85
        $region50: #{tpu_custom_call.1} parent=39 // pred_check_branch
          %247 = sbr.rel (%p245) target = $region52
        $region51: #{tpu_custom_call.1} parent=39 // pred_region
          %249 = dma.done [#allocation6], 64
        $region52: #{tpu_custom_call.1} parent=39 // pred_fallthru
          _
        %s250 = sand.u32 %s30, 1
        %s251 = scalar_lea.sflag [#allocation4], %s250
        %s252 = sand.u32 %s30, 1
        %s253 = smul.addr %s252, 8
        %s254 = scalar_lea.vmem [#allocation3], %s253
        %p255 = pneg %p43
        %p256 = pneg %p40
        %p257 = pneg %p64
        %p258 = pneg %p61
        %p259 = pneg %p85
        %p260 = pneg %p82
        %p261 = pneg %p106
        %p262 = pneg %p103
        %p263 = pneg %p127
        %p264 = pneg %p124
        %p265 = pneg %p153
        %p266 = pneg %p150
        %p267 = scmp.lt.s32.totalorder %s22, 1
        %s268 = scalar_select %p267, %s22, 1
        %s269 = scalar_lea.vmem %s5, %s268
        %p270 = scmp.lt.s32.totalorder %s22, 1
        %s271 = scalar_select %p270, %s22, 1
        %s272 = scalar_lea.vmem %s5, %s271
        %v273 = vld [vmem:[%s234] sm:$0xff]
        %v274 = vld [vmem:[#allocation5] sm:$0xff]
        %v275 = vld [vmem:[#allocation5 + $0x8] sm:$0xff]
        %v276 = vld [vmem:[#allocation5 + $0x10] sm:$0xff]
        %v277 = vld [vmem:[#allocation5 + $0x18] sm:$0xff]
        %v278 = vld [vmem:[#allocation5 + $0x20] sm:$0xff]
        %v279 = vld [vmem:[#allocation5 + $0x28] sm:$0xff]
        %v280 = vld [vmem:[#allocation5 + $0x30] sm:$0xff]
        %v281 = vld [vmem:[#allocation5 + $0x38] sm:$0xff]
        %v282 = vld [vmem:[#allocation5 + $0x40] sm:$0xff]
        %v283 = vld [vmem:[#allocation5 + $0x48] sm:$0xff]
        %v284 = vld [vmem:[#allocation5 + $0x50] sm:$0xff]
        %v285 = vld [vmem:[#allocation5 + $0x58] sm:$0xff]
        %v286 = vld [vmem:[#allocation5 + $0x60] sm:$0xff]
        %v287 = vld [vmem:[#allocation5 + $0x68] sm:$0xff]
        %v288 = vld [vmem:[#allocation5 + $0x70] sm:$0xff]
        %v289 = vld [vmem:[#allocation5 + $0x78] sm:$0xff]
        %v290 = vld [vmem:[#allocation5 + $0x80] sm:$0xff]
        %v291 = vld [vmem:[#allocation5 + $0x88] sm:$0xff]
        %v292 = vld [vmem:[#allocation5 + $0x90] sm:$0xff]
        %v293 = vld [vmem:[#allocation5 + $0x98] sm:$0xff]
        %vm294 = vcmask 261120
        %v296 = vsel %vm294, %v273, 0
        %298 = vmatpush.msra.mxu0 0.0
        %299 = vmatpush.msra.mxu0 0.0
        %300 = vmatpush.msra.mxu0 0.0
        %301 = vmatpush.msra.mxu0 0.0
        %302 = vmatpush.msra.mxu0 0.0
        %303 = vmatpush.msra.mxu0 0.0
        %304 = vmatpush.msra.mxu0 0.0
        %305 = vmatpush.msra.mxu0 0.0
        %306 = vmatpush.msra.mxu0 0.0
        %307 = vmatpush.msra.mxu0 0.0
        %308 = vmatpush.msra.mxu0 0.0
        %309 = vmatpush.msra.mxu0 0.0
        %310 = vmatpush.msra.mxu0 %v289
        %311 = vmatpush.msra.mxu0 %v284
        %312 = vmatpush.msra.mxu0 %v279
        %313 = vmatpush.msra.mxu0 %v274
        %314 = vmatmul.f32.gmra.mxu0 %v296
        %v315 = vpop.f32.mrf.mxu0
        %v316 = vadd.f32 0.0, %v315
        %317 = vdwg.mxu0
        %318 = vmatpush.msra.mxu0 0.0
        %319 = vmatpush.msra.mxu0 0.0
        %320 = vmatpush.msra.mxu0 0.0
        %321 = vmatpush.msra.mxu0 0.0
        %322 = vmatpush.msra.mxu0 0.0
        %323 = vmatpush.msra.mxu0 0.0
        %324 = vmatpush.msra.mxu0 0.0
        %325 = vmatpush.msra.mxu0 0.0
        %326 = vmatpush.msra.mxu0 0.0
        %327 = vmatpush.msra.mxu0 0.0
        %328 = vmatpush.msra.mxu0 0.0
        %329 = vmatpush.msra.mxu0 0.0
        %330 = vmatpush.msra.mxu0 %v290
        %331 = vmatpush.msra.mxu0 %v285
        %332 = vmatpush.msra.mxu0 %v280
        %333 = vmatpush.msra.mxu0 %v275
        %334 = vmatmul.f32.gmra.mxu0 %v296
        %v335 = vpop.f32.mrf.mxu0
        %v336 = vadd.f32 0.0, %v335
        %337 = vdwg.mxu0
        %338 = vmatpush.msra.mxu0 0.0
        %339 = vmatpush.msra.mxu0 0.0
        %340 = vmatpush.msra.mxu0 0.0
        %341 = vmatpush.msra.mxu0 0.0
        %342 = vmatpush.msra.mxu0 0.0
        %343 = vmatpush.msra.mxu0 0.0
        %344 = vmatpush.msra.mxu0 0.0
        %345 = vmatpush.msra.mxu0 0.0
        %346 = vmatpush.msra.mxu0 0.0
        %347 = vmatpush.msra.mxu0 0.0
        %348 = vmatpush.msra.mxu0 0.0
        %349 = vmatpush.msra.mxu0 0.0
        %350 = vmatpush.msra.mxu0 %v291
        %351 = vmatpush.msra.mxu0 %v286
        %352 = vmatpush.msra.mxu0 %v281
        %353 = vmatpush.msra.mxu0 %v276
        %354 = vmatmul.f32.gmra.mxu0 %v296
        %v355 = vpop.f32.mrf.mxu0
        %v356 = vadd.f32 0.0, %v355
        %357 = vdwg.mxu0
        %358 = vmatpush.msra.mxu0 0.0
        %359 = vmatpush.msra.mxu0 0.0
        %360 = vmatpush.msra.mxu0 0.0
        %361 = vmatpush.msra.mxu0 0.0
        %362 = vmatpush.msra.mxu0 0.0
        %363 = vmatpush.msra.mxu0 0.0
        %364 = vmatpush.msra.mxu0 0.0
        %365 = vmatpush.msra.mxu0 0.0
        %366 = vmatpush.msra.mxu0 0.0
        %367 = vmatpush.msra.mxu0 0.0
        %368 = vmatpush.msra.mxu0 0.0
        %369 = vmatpush.msra.mxu0 0.0
        %370 = vmatpush.msra.mxu0 %v292
        %371 = vmatpush.msra.mxu0 %v287
        %372 = vmatpush.msra.mxu0 %v282
        %373 = vmatpush.msra.mxu0 %v277
        %374 = vmatmul.f32.gmra.mxu0 %v296
        %v375 = vpop.f32.mrf.mxu0
        %v376 = vadd.f32 0.0, %v375
        %377 = vdwg.mxu0
        %378 = vmatpush.msra.mxu0 0.0
        %379 = vmatpush.msra.mxu0 0.0
        %380 = vmatpush.msra.mxu0 0.0
        %381 = vmatpush.msra.mxu0 0.0
        %382 = vmatpush.msra.mxu0 0.0
        %383 = vmatpush.msra.mxu0 0.0
        %384 = vmatpush.msra.mxu0 0.0
        %385 = vmatpush.msra.mxu0 0.0
        %386 = vmatpush.msra.mxu0 0.0
        %387 = vmatpush.msra.mxu0 0.0
        %388 = vmatpush.msra.mxu0 0.0
        %389 = vmatpush.msra.mxu0 0.0
        %390 = vmatpush.msra.mxu0 %v293
        %391 = vmatpush.msra.mxu0 %v288
        %392 = vmatpush.msra.mxu0 %v283
        %393 = vmatpush.msra.mxu0 %v278
        %394 = vmatmul.f32.gmra.mxu0 %v296
        %v395 = vpop.f32.mrf.mxu0
        %v396 = vadd.f32 0.0, %v395
        %397 = vdwg.mxu0
        %v398 = vld [vmem:[#allocation7] sm:$0xf]
        %v400 = vperm.slane %v398, 0
        %v401 = vperm.slane %v398, 1
        %v402 = vperm.slane %v398, 2
        %v403 = vperm.slane %v398, 3
        %v408 = vadd.f32 %v316, %v400
        %v409 = vadd.f32 %v336, %v401
        %v410 = vadd.f32 %v356, %v402
        %v411 = vadd.f32 %v376, %v403
        %v412 = vtanh.pop %v408
        %v413 = vtanh.pop %v409
        %v414 = vtanh.pop %v410
        %v415 = vtanh.pop %v411
        %v416 = vld [vmem:[%s3] sm:$0xf]
        %v418 = vperm.slane %v416, 0
        %v419 = vperm.slane %v416, 1
        %v420 = vperm.slane %v416, 2
        %v421 = vperm.slane %v416, 3
        %v426 = vmul.f32 %v412, %v418
        %v427 = vmul.f32 %v413, %v419
        %v428 = vmul.f32 %v414, %v420
        %v429 = vmul.f32 %v415, %v421
        %v430 = vadd.f32 %v426, %v427
        %v431 = vadd.f32 %v430, %v428
        %v432 = vadd.f32 %v431, %v429
        %433 = vadd.xlane.f32.xlu0 %v432
        %v434 = vpop.xlane.xlu0 %433
        %435 = vadd.xlane.f32.xlu0 %v396
        %v436 = vpop.xlane.xlu0 %435
        %v437 = vrot.slane %v434, 4
        %v438 = vmax.f32 %v434, %v437
        %v439 = vrot.slane %v438, 2
        %v440 = vmax.f32 %v438, %v439
        %v441 = vrot.slane %v440, 1
        %v442 = vmax.f32 %v440, %v441
        %v443 = vsub.f32 %v434, %v442
        %v444 = vmul.f32 %v443, 1.442695
        %v445 = vpow.pop %v444
        %v446 = vrot.slane %v445, 4
        %v447 = vadd.f32 %v445, %v446
        %v448 = vrot.slane %v447, 2
        %v449 = vadd.f32 %v447, %v448
        %v450 = vrot.slane %v449, 1
        %v451 = vadd.f32 %v449, %v450
        %v452 = vrcp.pop %v451
        %v453 = vmul.f32 %v445, %v452
        %v454 = vmul.f32 %v453, %v436
        %v455 = vrot.slane %v454, 4
        %v456 = vadd.f32 %v454, %v455
        %v457 = vrot.slane %v456, 2
        %v458 = vadd.f32 %v456, %v457
        %v459 = vrot.slane %v458, 1
        %v460 = vadd.f32 %v458, %v459
        %v461 = vld [vmem:[#allocation2] sm:$0x1]
        %s462 = vtos %v461
        %v463 = vstv %s462
        %v464 = vadd.f32 %v460, %v463
        %vm465 = vcmask 0
        %466 = vst.msk [vmem:[%s272] sm:$0x1] %vm465, %v464
        %p467 = scmp.lt.s32.totalorder %s22, 1
        %s468 = scalar_select %p467, %s22, 1
        %s469 = scalar_lea.vmem %s5, %s468
        // Predicated region
        $region53: #{tpu_custom_call.1} parent=39 // pred_check
          %p470 = pneg %p150
        $region54: #{tpu_custom_call.1} parent=39 // pred_check_branch
          %472 = sbr.rel (%p470) target = $region56
        $region55: #{tpu_custom_call.1} parent=39 // pred_region
          _
        $region56: #{tpu_custom_call.1} parent=39 // pred_fallthru
          _
      $region40: #{tpu_custom_call.1} parent=5 // pred_fallthru
        _
      %p473 = scmp.le.s32.totalorder 2, %s17
      // Predicated region
      $region57: #{tpu_custom_call.1} parent=5 // pred_check
        %p474 = pneg %p473
      $region58: #{tpu_custom_call.1} parent=5 // pred_check_branch
        %476 = sbr.rel (%p474) target = $region60
      $region59: #{tpu_custom_call.1} parent=5 // pred_region
        %s477 = ssub.s32 %s17, 2
        // Predicated region
        $region61: #{tpu_custom_call.1} parent=59 // pred_check
          %p478 = pneg %p156
        $region62: #{tpu_custom_call.1} parent=59 // pred_check_branch
          %480 = sbr.rel (%p478) target = $region64
        $region63: #{tpu_custom_call.1} parent=59 // pred_region
          %p481 = scmp.lt.s32.totalorder %s23, 1
          %s482 = scalar_select %p481, %s23, 1
          %s483 = scalar_lea.vmem %s5, %s482
        $region64: #{tpu_custom_call.1} parent=59 // pred_fallthru
          _
      $region60: #{tpu_custom_call.1} parent=5 // pred_fallthru
        _
    $region6: #{tpu_custom_call.1} parent=1 // loop_footer
      %s21 = sadd.s32 1, %s17
    $region7: #{tpu_custom_call.1} parent=1 // loop_footer_branch
      %16 = sbr.rel target = $region3
    $region8: #{tpu_custom_call.1} parent=1 // loop_exit
      _
    %484 = vsyncpa [#allocation4], 1
    %s485 = scalar_lea.sflag [#allocation4], 1
    %486 = vsyncpa %s485, 1
    %487 = vsyncpa [#allocation6], 1

</llo_original>
